<compile_context>
chip_gen: v7x
topology: tpu7x:2x2x1
jax: 0.10.0
libtpu: 0.0.40
codegen_flags: <defaults>
</compile_context>

<pallas_src>
import numpy as np
import jax
import jax.numpy as jnp
from jax.experimental import pallas as pl
from jax.experimental.pallas import tpu as pltpu

SEQ = 23            # sequence length implied by fc1: 32 * (SEQ - 4) == 608
SLAB = SEQ * 5      # 23 mismatch cols + 92 target cols = 115
DEFAULT_TB = 512    # samples per grid step (batch tile)


# --------------------------------------------------------------------------
# Wrapper-side parameter plumbing (plain JAX glue, runs once)
# --------------------------------------------------------------------------
def _conv1d_matrix(w, l_in):
    """Dense im2col matrix for a VALID conv1d.

    w: (Cout, Cin, K) torch layout. Input rows are position-major
    (index = l*Cin + ci); output columns are position-major
    (index = lo*Cout + co), so  y_row = x_row @ M  reproduces the conv.
    """
    c_out, c_in, k = w.shape
    l_out = l_in - k + 1
    lo = np.arange(l_out)
    co = np.arange(c_out)
    mat = jnp.zeros((l_in * c_in, l_out * c_out), jnp.float32)
    for kk in range(k):
        for ci in range(c_in):
            rows = (lo + kk) * c_in + ci                   # (l_out,)
            cols = lo[:, None] * c_out + co[None, :]       # (l_out, c_out)
            vals = jnp.broadcast_to(w[:, ci, kk].astype(jnp.float32),
                                    (l_out, c_out))
            mat = mat.at[rows[:, None], cols].set(vals)
    return mat


def _conv_bias_row(b, l_out):
    return jnp.tile(b.astype(jnp.float32), l_out)[None, :]   # (1, l_out*Cout)


# --------------------------------------------------------------------------
# Kernel: one batch tile (TB samples) per grid step
# --------------------------------------------------------------------------
def siamese_kernel(x_ref, w1_ref, b1_ref, w2_ref, b2_ref,
                   wf1_ref, bf1_ref, wf2_ref, bf2_ref, w3_ref, b3_ref,
                   o_ref):
    x = x_ref[...]                                                # (TB, 115)

    # conv1 (both heads, block-diagonal im2col weights) + ReLU
    h = jnp.dot(x, w1_ref[...], preferred_element_type=jnp.float32)
    h = jnp.maximum(h + b1_ref[...], 0.0)                         # (TB, 252)

    # conv2 (both heads) + ReLU
    h = jnp.dot(h, w2_ref[...], preferred_element_type=jnp.float32)
    h = jnp.maximum(h + b2_ref[...], 0.0)                         # (TB, 608)

    # fc1 + ReLU : single (TB, 608) @ (608, 60) matmul
    h = jnp.dot(h, wf1_ref[...], preferred_element_type=jnp.float32)
    h = jnp.maximum(h + bf1_ref[...], 0.0)                        # (TB, 60)

    # fc2 + ReLU
    h = jnp.dot(h, wf2_ref[...], preferred_element_type=jnp.float32)
    h = jnp.maximum(h + bf2_ref[...], 0.0)                        # (TB, 20)

    # fc3 (N=1): keep off the MXU -> VPU multiply + lane reduction
    logit = jnp.sum(h * w3_ref[...], axis=1, keepdims=True) + b3_ref[...]
    o_ref[...] = jax.nn.sigmoid(logit)                            # (TB, 1)


# --------------------------------------------------------------------------
# Forward wrapper
# --------------------------------------------------------------------------
def siamese_cnn_forward(mismatches, guide, target, params, *,
                        batch_tile=DEFAULT_TB):
    """mismatches: (B, 23) f32, guide: unused (as in torch), target: (B, 23, 4)."""
    del guide  # NOTE: the reference torch forward never uses `guide`
    B, L = mismatches.shape
    assert L == SEQ and target.shape == (B, SEQ, 4)
    l1, l2 = L - 2, L - 4          # 21, 19

    # fused, contiguous input slab: (B, 115)
    x = jnp.concatenate(
        [mismatches.astype(jnp.float32),
         target.reshape(B, L * 4).astype(jnp.float32)], axis=1)

    tb = batch_tile if B >= batch_tile else max(8, -(-B // 8) * 8)
    n_tiles = -(-B // tb)
    b_pad = n_tiles * tb
    if b_pad != B:
        x = jnp.pad(x, ((0, b_pad - B), (0, 0)))

    # conv1 combined (block diagonal over the two heads): (115, 252)
    w1 = jnp.zeros((SLAB, 2 * l1 * 6), jnp.float32)
    w1 = w1.at[:L, :l1 * 6].set(_conv1d_matrix(params["conv1_head1_w"], L))
    w1 = w1.at[L:, l1 * 6:].set(_conv1d_matrix(params["conv1_head2_w"], L))
    b1 = jnp.concatenate([_conv_bias_row(params["conv1_head1_b"], l1),
                          _conv_bias_row(params["conv1_head2_b"], l1)], axis=1)

    # conv2 combined: (252, 608)
    w2 = jnp.zeros((2 * l1 * 6, 2 * l2 * 16), jnp.float32)
    w2 = w2.at[:l1 * 6, :l2 * 16].set(_conv1d_matrix(params["conv2_head1_w"], l1))
    w2 = w2.at[l1 * 6:, l2 * 16:].set(_conv1d_matrix(params["conv2_head2_w"], l1))
    b2 = jnp.concatenate([_conv_bias_row(params["conv2_head1_b"], l2),
                          _conv_bias_row(params["conv2_head2_b"], l2)], axis=1)

    # fc1: torch flatten is channel-major (c*19 + l); our conv2 output is
    # position-major (l*16 + c) per head -> permute fc1 columns once here.
    lo = np.arange(l2)[:, None]
    co = np.arange(16)[None, :]
    perm_h = (co * l2 + lo).reshape(-1)               # [l*16+c] -> c*19+l
    perm = np.concatenate([perm_h, 16 * l2 + perm_h])
    wf1 = params["fc1_w"].astype(jnp.float32)[:, perm].T        # (608, 60)
    bf1 = params["fc1_b"].astype(jnp.float32)[None, :]
    wf2 = params["fc2_w"].astype(jnp.float32).T                 # (60, 20)
    bf2 = params["fc2_b"].astype(jnp.float32)[None, :]
    w3 = params["fc3_w"].astype(jnp.float32)                    # (1, 20)
    b3 = params["fc3_b"].astype(jnp.float32).reshape(1, 1)

    weights = (w1, b1, w2, b2, wf1, bf1, wf2, bf2, w3, b3)

    def rep(arr):                  # replicated weight: constant block index
        n = arr.ndim
        return pl.BlockSpec(arr.shape, lambda i, n=n: (0,) * n)

    out = pl.pallas_call(
        siamese_kernel,
        grid=(n_tiles,),
        in_specs=[pl.BlockSpec((tb, SLAB), lambda i: (i, 0))] +
                 [rep(a) for a in weights],
        out_specs=pl.BlockSpec((tb, 1), lambda i: (i, 0)),
        out_shape=jax.ShapeDtypeStruct((b_pad, 1), jnp.float32),
        compiler_params=pltpu.CompilerParams(
            dimension_semantics=("parallel",)),
    )(x, *weights)
    return out[:B]                                              # (B, 1)


# --------------------------------------------------------------------------
# Pure-JAX reference (replica of the torch forward) for verification
# --------------------------------------------------------------------------
def reference_forward(mismatches, guide, target, params):
    del guide

    def conv_relu(x, w, b):  # x: (B, Cin, L), w: (Cout, Cin, K)
        y = jax.lax.conv_general_dilated(
            x, w, window_strides=(1,), padding="VALID",
            dimension_numbers=("NCH", "OIH", "NCH"))
        return jax.nn.relu(y + b[None, :, None])

    mm = mismatches[:, None, :]
    mm = conv_relu(mm, params["conv1_head1_w"], params["conv1_head1_b"])
    mm = conv_relu(mm, params["conv2_head1_w"], params["conv2_head1_b"])
    tg = jnp.transpose(target, (0, 2, 1))
    tg = conv_relu(tg, params["conv1_head2_w"], params["conv1_head2_b"])
    tg = conv_relu(tg, params["conv2_head2_w"], params["conv2_head2_b"])
    x = jnp.concatenate([mm, tg], axis=1).reshape(mismatches.shape[0], -1)
    x = jax.nn.relu(x @ params["fc1_w"].T + params["fc1_b"])
    x = jax.nn.relu(x @ params["fc2_w"].T + params["fc2_b"])
    x = x @ params["fc3_w"].T + params["fc3_b"]
    return jax.nn.sigmoid(x)


if __name__ == "__main__":
    B, L = 2, SEQ
    key = jax.random.PRNGKey(0)
    keys = jax.random.split(key, 20)

    def uni(k, shape, fan_in):
        bound = 1.0 / np.sqrt(fan_in)
        return jax.random.uniform(k, shape, jnp.float32, -bound, bound)

    params = {
        "conv1_head1_w": uni(keys[0], (6, 1, 3), 1 * 3),
        "conv1_head1_b": uni(keys[1], (6,), 1 * 3),
        "conv2_head1_w": uni(keys[2], (16, 6, 3), 6 * 3),
        "conv2_head1_b": uni(keys[3], (16,), 6 * 3),
        "conv1_head2_w": uni(keys[4], (6, 4, 3), 4 * 3),
        "conv1_head2_b": uni(keys[5], (6,), 4 * 3),
        "conv2_head2_w": uni(keys[6], (16, 6, 3), 6 * 3),
        "conv2_head2_b": uni(keys[7], (16,), 6 * 3),
        "fc1_w": uni(keys[8], (60, 608), 608),
        "fc1_b": uni(keys[9], (60,), 608),
        "fc2_w": uni(keys[10], (20, 60), 60),
        "fc2_b": uni(keys[11], (20,), 60),
        "fc3_w": uni(keys[12], (1, 20), 20),
        "fc3_b": uni(keys[13], (1,), 20),
    }

    mismatches = jax.random.normal(keys[14], (B, L), jnp.float32)
    guide = jax.random.normal(keys[15], (B, L, 4), jnp.float32)   # unused
    target = jax.random.normal(keys[16], (B, L, 4), jnp.float32)

    out = siamese_cnn_forward(mismatches, guide, target, params)
    out = jax.block_until_ready(out)

    ref = reference_forward(mismatches, guide, target, params)
    assert out.shape == (B, 1)
    np.testing.assert_allclose(np.asarray(out), np.asarray(ref),
                               rtol=1e-4, atol=1e-5)

    print("KERNEL_OK")
</pallas_src>

<mosaic_0001>
module attributes {stable_mosaic.version = 11 : i64} {
  func.func @siamese_kernel(%arg0: i32, %arg1: memref<8x115xf32, #tpu.memory_space<vmem>>, %arg2: memref<115x252xf32, #tpu.memory_space<vmem>>, %arg3: memref<1x252xf32, #tpu.memory_space<vmem>>, %arg4: memref<252x608xf32, #tpu.memory_space<vmem>>, %arg5: memref<1x608xf32, #tpu.memory_space<vmem>>, %arg6: memref<608x60xf32, #tpu.memory_space<vmem>>, %arg7: memref<1x60xf32, #tpu.memory_space<vmem>>, %arg8: memref<60x20xf32, #tpu.memory_space<vmem>>, %arg9: memref<1x20xf32, #tpu.memory_space<vmem>>, %arg10: memref<1x20xf32, #tpu.memory_space<vmem>>, %arg11: memref<1x1xf32, #tpu.memory_space<vmem>>, %arg12: memref<8x1xf32, #tpu.memory_space<vmem>>) attributes {dimension_semantics = [#tpu.dimension_semantics<parallel>], iteration_bounds = array<i64: 1>, scalar_prefetch = 0 : i64, scratch_operands = 0 : i64, tpu.core_type = #tpu.core_type<tc>, window_params = [{transform_indices = @transform_0, window_bounds = array<i64: 8, 115>}, {pipeline_mode = #tpu.pipeline_mode<synchronous>, transform_indices = @transform_1, window_bounds = array<i64: 115, 252>}, {pipeline_mode = #tpu.pipeline_mode<synchronous>, transform_indices = @transform_2, window_bounds = array<i64: 1, 252>}, {pipeline_mode = #tpu.pipeline_mode<synchronous>, transform_indices = @transform_3, window_bounds = array<i64: 252, 608>}, {pipeline_mode = #tpu.pipeline_mode<synchronous>, transform_indices = @transform_4, window_bounds = array<i64: 1, 608>}, {pipeline_mode = #tpu.pipeline_mode<synchronous>, transform_indices = @transform_5, window_bounds = array<i64: 608, 60>}, {pipeline_mode = #tpu.pipeline_mode<synchronous>, transform_indices = @transform_6, window_bounds = array<i64: 1, 60>}, {pipeline_mode = #tpu.pipeline_mode<synchronous>, transform_indices = @transform_7, window_bounds = array<i64: 60, 20>}, {pipeline_mode = #tpu.pipeline_mode<synchronous>, transform_indices = @transform_8, window_bounds = array<i64: 1, 20>}, {pipeline_mode = #tpu.pipeline_mode<synchronous>, transform_indices = @transform_9, window_bounds = array<i64: 1, 20>}, {pipeline_mode = #tpu.pipeline_mode<synchronous>, transform_indices = @transform_10, window_bounds = array<i64: 1, 1>}, {transform_indices = @transform_11, window_bounds = array<i64: 8, 1>}]} {
    %c0 = arith.constant 0 : index
    %c0_0 = arith.constant 0 : index
    %0 = vector.load %arg1[%c0, %c0_0] : memref<8x115xf32, #tpu.memory_space<vmem>>, vector<8x115xf32>
    %c0_1 = arith.constant 0 : index
    %c0_2 = arith.constant 0 : index
    %1 = vector.load %arg2[%c0_1, %c0_2] : memref<115x252xf32, #tpu.memory_space<vmem>>, vector<115x252xf32>
    %cst = arith.constant dense<0.000000e+00> : vector<8x252xf32>
    %2 = tpu.matmul %0, %1, %cst {dimension_numbers = #tpu.dot_dimension_numbers<[1], [0], [0], [1], [0, 0, 1, 1], [], []>} : vector<8x115xf32>, vector<115x252xf32>, vector<8x252xf32> -> vector<8x252xf32>
    %c0_3 = arith.constant 0 : index
    %c0_4 = arith.constant 0 : index
    %3 = vector.load %arg3[%c0_3, %c0_4] : memref<1x252xf32, #tpu.memory_space<vmem>>, vector<1x252xf32>
    %4 = vector.broadcast %3 : vector<1x252xf32> to vector<8x252xf32>
    %5 = arith.addf %2, %4 : vector<8x252xf32>
    %cst_5 = arith.constant 0.000000e+00 : f32
    %6 = vector.broadcast %cst_5 : f32 to vector<8x252xf32>
    %7 = arith.maximumf %5, %6 : vector<8x252xf32>
    %c0_6 = arith.constant 0 : index
    %c0_7 = arith.constant 0 : index
    %8 = vector.load %arg4[%c0_6, %c0_7] : memref<252x608xf32, #tpu.memory_space<vmem>>, vector<252x608xf32>
    %cst_8 = arith.constant dense<0.000000e+00> : vector<8x608xf32>
    %9 = tpu.matmul %7, %8, %cst_8 {dimension_numbers = #tpu.dot_dimension_numbers<[1], [0], [0], [1], [0, 0, 1, 1], [], []>} : vector<8x252xf32>, vector<252x608xf32>, vector<8x608xf32> -> vector<8x608xf32>
    %c0_9 = arith.constant 0 : index
    %c0_10 = arith.constant 0 : index
    %10 = vector.load %arg5[%c0_9, %c0_10] : memref<1x608xf32, #tpu.memory_space<vmem>>, vector<1x608xf32>
    %11 = vector.broadcast %10 : vector<1x608xf32> to vector<8x608xf32>
    %12 = arith.addf %9, %11 : vector<8x608xf32>
    %cst_11 = arith.constant 0.000000e+00 : f32
    %13 = vector.broadcast %cst_11 : f32 to vector<8x608xf32>
    %14 = arith.maximumf %12, %13 : vector<8x608xf32>
    %c0_12 = arith.constant 0 : index
    %c0_13 = arith.constant 0 : index
    %15 = vector.load %arg6[%c0_12, %c0_13] : memref<608x60xf32, #tpu.memory_space<vmem>>, vector<608x60xf32>
    %cst_14 = arith.constant dense<0.000000e+00> : vector<8x60xf32>
    %16 = tpu.matmul %14, %15, %cst_14 {dimension_numbers = #tpu.dot_dimension_numbers<[1], [0], [0], [1], [0, 0, 1, 1], [], []>} : vector<8x608xf32>, vector<608x60xf32>, vector<8x60xf32> -> vector<8x60xf32>
    %c0_15 = arith.constant 0 : index
    %c0_16 = arith.constant 0 : index
    %17 = vector.load %arg7[%c0_15, %c0_16] : memref<1x60xf32, #tpu.memory_space<vmem>>, vector<1x60xf32>
    %18 = vector.broadcast %17 : vector<1x60xf32> to vector<8x60xf32>
    %19 = arith.addf %16, %18 : vector<8x60xf32>
    %cst_17 = arith.constant 0.000000e+00 : f32
    %20 = vector.broadcast %cst_17 : f32 to vector<8x60xf32>
    %21 = arith.maximumf %19, %20 : vector<8x60xf32>
    %c0_18 = arith.constant 0 : index
    %c0_19 = arith.constant 0 : index
    %22 = vector.load %arg8[%c0_18, %c0_19] : memref<60x20xf32, #tpu.memory_space<vmem>>, vector<60x20xf32>
    %cst_20 = arith.constant dense<0.000000e+00> : vector<8x20xf32>
    %23 = tpu.matmul %21, %22, %cst_20 {dimension_numbers = #tpu.dot_dimension_numbers<[1], [0], [0], [1], [0, 0, 1, 1], [], []>} : vector<8x60xf32>, vector<60x20xf32>, vector<8x20xf32> -> vector<8x20xf32>
    %c0_21 = arith.constant 0 : index
    %c0_22 = arith.constant 0 : index
    %24 = vector.load %arg9[%c0_21, %c0_22] : memref<1x20xf32, #tpu.memory_space<vmem>>, vector<1x20xf32>
    %25 = vector.broadcast %24 : vector<1x20xf32> to vector<8x20xf32>
    %26 = arith.addf %23, %25 : vector<8x20xf32>
    %cst_23 = arith.constant 0.000000e+00 : f32
    %27 = vector.broadcast %cst_23 : f32 to vector<8x20xf32>
    %28 = arith.maximumf %26, %27 : vector<8x20xf32>
    %c0_24 = arith.constant 0 : index
    %c0_25 = arith.constant 0 : index
    %29 = vector.load %arg10[%c0_24, %c0_25] : memref<1x20xf32, #tpu.memory_space<vmem>>, vector<1x20xf32>
    %30 = vector.broadcast %29 : vector<1x20xf32> to vector<8x20xf32>
    %31 = arith.mulf %28, %30 : vector<8x20xf32>
    %cst_26 = arith.constant dense<0.000000e+00> : vector<8xf32>
    %32 = vector.multi_reduction <add>, %31, %cst_26 [1] : vector<8x20xf32> to vector<8xf32>
    %33 = vector.shape_cast %32 : vector<8xf32> to vector<8x1xf32>
    %c0_27 = arith.constant 0 : index
    %c0_28 = arith.constant 0 : index
    %34 = vector.load %arg11[%c0_27, %c0_28] : memref<1x1xf32, #tpu.memory_space<vmem>>, vector<1x1xf32>
    %35 = vector.broadcast %34 : vector<1x1xf32> to vector<8x1xf32>
    %36 = arith.addf %33, %35 : vector<8x1xf32>
    %37 = arith.negf %36 : vector<8x1xf32>
    %38 = math.exp %37 : vector<8x1xf32>
    %cst_29 = arith.constant 1.000000e+00 : f32
    %39 = vector.broadcast %cst_29 : f32 to vector<8x1xf32>
    %40 = arith.addf %39, %38 : vector<8x1xf32>
    %41 = arith.divf %39, %40 : vector<8x1xf32>
    %c0_30 = arith.constant 0 : index
    %c0_31 = arith.constant 0 : index
    %42 = vector.load %arg12[%c0_30, %c0_31] : memref<8x1xf32, #tpu.memory_space<vmem>>, vector<8x1xf32>
    tpu.vector_store %arg12[%c0_30, %c0_31], %41 {strides = array<i32>} : memref<8x1xf32, #tpu.memory_space<vmem>>, vector<8x1xf32>,
    return
  }
  func.func @transform_0(%arg0: i32) -> (i32, i32) {
    %c0_i32 = arith.constant 0 : i32
    %c0_i32_0 = arith.constant 0 : i32
    return %arg0, %c0_i32 : i32, i32
  }
  func.func @transform_1(%arg0: i32) -> (i32, i32) {
    %c0_i32 = arith.constant 0 : i32
    %c0_i32_0 = arith.constant 0 : i32
    %c0_i32_1 = arith.constant 0 : i32
    return %c0_i32, %c0_i32_0 : i32, i32
  }
  func.func @transform_2(%arg0: i32) -> (i32, i32) {
    %c0_i32 = arith.constant 0 : i32
    %c0_i32_0 = arith.constant 0 : i32
    %c0_i32_1 = arith.constant 0 : i32
    return %c0_i32, %c0_i32_0 : i32, i32
  }
  func.func @transform_3(%arg0: i32) -> (i32, i32) {
    %c0_i32 = arith.constant 0 : i32
    %c0_i32_0 = arith.constant 0 : i32
    %c0_i32_1 = arith.constant 0 : i32
    return %c0_i32, %c0_i32_0 : i32, i32
  }
  func.func @transform_4(%arg0: i32) -> (i32, i32) {
    %c0_i32 = arith.constant 0 : i32
    %c0_i32_0 = arith.constant 0 : i32
    %c0_i32_1 = arith.constant 0 : i32
    return %c0_i32, %c0_i32_0 : i32, i32
  }
  func.func @transform_5(%arg0: i32) -> (i32, i32) {
    %c0_i32 = arith.constant 0 : i32
    %c0_i32_0 = arith.constant 0 : i32
    %c0_i32_1 = arith.constant 0 : i32
    return %c0_i32, %c0_i32_0 : i32, i32
  }
  func.func @transform_6(%arg0: i32) -> (i32, i32) {
    %c0_i32 = arith.constant 0 : i32
    %c0_i32_0 = arith.constant 0 : i32
    %c0_i32_1 = arith.constant 0 : i32
    return %c0_i32, %c0_i32_0 : i32, i32
  }
  func.func @transform_7(%arg0: i32) -> (i32, i32) {
    %c0_i32 = arith.constant 0 : i32
    %c0_i32_0 = arith.constant 0 : i32
    %c0_i32_1 = arith.constant 0 : i32
    return %c0_i32, %c0_i32_0 : i32, i32
  }
  func.func @transform_8(%arg0: i32) -> (i32, i32) {
    %c0_i32 = arith.constant 0 : i32
    %c0_i32_0 = arith.constant 0 : i32
    %c0_i32_1 = arith.constant 0 : i32
    return %c0_i32, %c0_i32_0 : i32, i32
  }
  func.func @transform_9(%arg0: i32) -> (i32, i32) {
    %c0_i32 = arith.constant 0 : i32
    %c0_i32_0 = arith.constant 0 : i32
    %c0_i32_1 = arith.constant 0 : i32
    return %c0_i32, %c0_i32_0 : i32, i32
  }
  func.func @transform_10(%arg0: i32) -> (i32, i32) {
    %c0_i32 = arith.constant 0 : i32
    %c0_i32_0 = arith.constant 0 : i32
    %c0_i32_1 = arith.constant 0 : i32
    return %c0_i32, %c0_i32_0 : i32, i32
  }
  func.func @transform_11(%arg0: i32) -> (i32, i32) {
    %c0_i32 = arith.constant 0 : i32
    %c0_i32_0 = arith.constant 0 : i32
    return %arg0, %c0_i32 : i32, i32
  }
}

</mosaic_0001>

<llo_original>
// kernel: tpu_custom_call.1
$region0: #{tpu_custom_call.1}
  #allocation0 [shape = 'u32[]', space=smem, size = 0x4, offset = 0x4, fixed_abs, tag = 'smem constant byte address 0x4 - core index']
  #allocation1 [shape = 'u32[144,128]{1,0:T(1,128)}', space=vmem, size = 0x12000, scoped, tag = 'internal scratch']
  #allocation2 [shape = 'f32[1,1]{1,0:T(1,128)S(1)}', space=vmem, size = 0x200, scoped, tag = 'scoped memory for tpu_custom_call.1']
  %s0 = inlined_call_operand.vmem [shape: f32[8,115], index: 0, kind: input, shape index: {}]
  %s1 = inlined_call_operand.vmem [shape: f32[115,252], index: 1, kind: input, shape index: {}]
  %s2 = inlined_call_operand.vmem [shape: f32[1,252], index: 2, kind: input, shape index: {}]
  %s3 = inlined_call_operand.vmem [shape: f32[252,608], index: 3, kind: input, shape index: {}]
  %s4 = inlined_call_operand.vmem [shape: f32[1,608], index: 4, kind: input, shape index: {}]
  %s5 = inlined_call_operand.vmem [shape: f32[608,60], index: 5, kind: input, shape index: {}]
  %s6 = inlined_call_operand.vmem [shape: f32[1,60], index: 6, kind: input, shape index: {}]
  %s7 = inlined_call_operand.vmem [shape: f32[60,20], index: 7, kind: input, shape index: {}]
  %s8 = inlined_call_operand.vmem [shape: f32[1,20], index: 8, kind: input, shape index: {}]
  %s9 = inlined_call_operand.vmem [shape: f32[1,20], index: 9, kind: input, shape index: {}]
  %s10 = inlined_call_operand.<no memory space> [shape: f32[1,1], index: 10, kind: input, shape index: {}]
  %s11 = inlined_call_operand.vmem [shape: f32[8,1], index: 11, kind: output, shape index: {}]
  %s12 = sld [smem:[#allocation0]]
  $region54: #{tpu_custom_call.1} parent=0
    _
  %s14 = ssub.s32 1, %s12
  %s15 = scalar_select 0, %s14, %s12
  %v16 = vstv %s10
  %17 = vst [vmem:[#allocation2] sm:$0x1] %v16
  // Predicated region
  $region2: #{tpu_custom_call.1} parent=0 // pred_check
    _
  $region3: #{tpu_custom_call.1} parent=0 // pred_check_branch
    %19 = sbr.rel (0) target = $region5
  $region4: #{tpu_custom_call.1} parent=0 // pred_region
    _
  $region5: #{tpu_custom_call.1} parent=0 // pred_fallthru
    _
  // Predicated region
  $region6: #{tpu_custom_call.1} parent=0 // pred_check
    _
  $region7: #{tpu_custom_call.1} parent=0 // pred_check_branch
    %21 = sbr.rel (0) target = $region9
  $region8: #{tpu_custom_call.1} parent=0 // pred_region
    _
  $region9: #{tpu_custom_call.1} parent=0 // pred_fallthru
    _
  // Predicated region
  $region10: #{tpu_custom_call.1} parent=0 // pred_check
    _
  $region11: #{tpu_custom_call.1} parent=0 // pred_check_branch
    %23 = sbr.rel (0) target = $region13
  $region12: #{tpu_custom_call.1} parent=0 // pred_region
    _
  $region13: #{tpu_custom_call.1} parent=0 // pred_fallthru
    _
  // Predicated region
  $region14: #{tpu_custom_call.1} parent=0 // pred_check
    _
  $region15: #{tpu_custom_call.1} parent=0 // pred_check_branch
    %25 = sbr.rel (0) target = $region17
  $region16: #{tpu_custom_call.1} parent=0 // pred_region
    _
  $region17: #{tpu_custom_call.1} parent=0 // pred_fallthru
    _
  // Predicated region
  $region18: #{tpu_custom_call.1} parent=0 // pred_check
    _
  $region19: #{tpu_custom_call.1} parent=0 // pred_check_branch
    %27 = sbr.rel (0) target = $region21
  $region20: #{tpu_custom_call.1} parent=0 // pred_region
    _
  $region21: #{tpu_custom_call.1} parent=0 // pred_fallthru
    _
  // Predicated region
  $region22: #{tpu_custom_call.1} parent=0 // pred_check
    _
  $region23: #{tpu_custom_call.1} parent=0 // pred_check_branch
    %29 = sbr.rel (0) target = $region25
  $region24: #{tpu_custom_call.1} parent=0 // pred_region
    _
  $region25: #{tpu_custom_call.1} parent=0 // pred_fallthru
    _
  // Predicated region
  $region26: #{tpu_custom_call.1} parent=0 // pred_check
    _
  $region27: #{tpu_custom_call.1} parent=0 // pred_check_branch
    %31 = sbr.rel (0) target = $region29
  $region28: #{tpu_custom_call.1} parent=0 // pred_region
    _
  $region29: #{tpu_custom_call.1} parent=0 // pred_fallthru
    _
  // Predicated region
  $region30: #{tpu_custom_call.1} parent=0 // pred_check
    _
  $region31: #{tpu_custom_call.1} parent=0 // pred_check_branch
    %33 = sbr.rel (0) target = $region33
  $region32: #{tpu_custom_call.1} parent=0 // pred_region
    _
  $region33: #{tpu_custom_call.1} parent=0 // pred_fallthru
    _
  // Predicated region
  $region34: #{tpu_custom_call.1} parent=0 // pred_check
    _
  $region35: #{tpu_custom_call.1} parent=0 // pred_check_branch
    %35 = sbr.rel (0) target = $region37
  $region36: #{tpu_custom_call.1} parent=0 // pred_region
    _
  $region37: #{tpu_custom_call.1} parent=0 // pred_fallthru
    _
  // Predicated region
  $region38: #{tpu_custom_call.1} parent=0 // pred_check
    _
  $region39: #{tpu_custom_call.1} parent=0 // pred_check_branch
    %37 = sbr.rel (0) target = $region41
  $region40: #{tpu_custom_call.1} parent=0 // pred_region
    _
  $region41: #{tpu_custom_call.1} parent=0 // pred_fallthru
    _
  // Predicated region
  $region42: #{tpu_custom_call.1} parent=0 // pred_check
    _
  $region43: #{tpu_custom_call.1} parent=0 // pred_check_branch
    %39 = sbr.rel (0) target = $region45
  $region44: #{tpu_custom_call.1} parent=0 // pred_region
    _
  $region45: #{tpu_custom_call.1} parent=0 // pred_fallthru
    _
  %v40 = vld [vmem:[%s0] sm:$0xff]
  %v41 = vld [vmem:[%s1] sm:$0xff]
  %v42 = vld [vmem:[%s1 + $0x8] sm:$0xff]
  %v43 = vld [vmem:[%s1 + $0x10] sm:$0xff]
  %v44 = vld [vmem:[%s1 + $0x18] sm:$0xff]
  %v45 = vld [vmem:[%s1 + $0x20] sm:$0xff]
  %v46 = vld [vmem:[%s1 + $0x28] sm:$0xff]
  %v47 = vld [vmem:[%s1 + $0x30] sm:$0xff]
  %v48 = vld [vmem:[%s1 + $0x38] sm:$0xff]
  %v49 = vld [vmem:[%s1 + $0x40] sm:$0xff]
  %v50 = vld [vmem:[%s1 + $0x48] sm:$0xff]
  %v51 = vld [vmem:[%s1 + $0x50] sm:$0xff]
  %v52 = vld [vmem:[%s1 + $0x58] sm:$0xff]
  %v53 = vld [vmem:[%s1 + $0x60] sm:$0xff]
  %v54 = vld [vmem:[%s1 + $0x68] sm:$0xff]
  %v55 = vld [vmem:[%s1 + $0x70] sm:$0xff]
  %v56 = vld [vmem:[%s1 + $0x78] sm:$0xff]
  %v57 = vld [vmem:[%s1 + $0x80] sm:$0xff]
  %v58 = vld [vmem:[%s1 + $0x88] sm:$0xff]
  %v59 = vld [vmem:[%s1 + $0x90] sm:$0xff]
  %v60 = vld [vmem:[%s1 + $0x98] sm:$0xff]
  %v61 = vld [vmem:[%s1 + $0xa0] sm:$0xff]
  %v62 = vld [vmem:[%s1 + $0xa8] sm:$0xff]
  %v63 = vld [vmem:[%s1 + $0xb0] sm:$0xff]
  %v64 = vld [vmem:[%s1 + $0xb8] sm:$0xff]
  %v65 = vld [vmem:[%s1 + $0xc0] sm:$0xff]
  %v66 = vld [vmem:[%s1 + $0xc8] sm:$0xff]
  %v67 = vld [vmem:[%s1 + $0xd0] sm:$0xff]
  %v68 = vld [vmem:[%s1 + $0xd8] sm:$0xff]
  %v69 = vld [vmem:[%s1 + $0xe0] sm:$0x7]
  %v70 = vld [vmem:[%s1 + $0xe8] sm:$0x7]
  %v71 = vld [vmem:[%s2] sm:$0x3]
  %v73 = vlaneseq
  %v74 = vshrl.u32 %v73, 7
  %v75 = vsub.s32 0, %v74
  %v76 = vrot.slane %v71, %v75
  %v77 = vlaneseq
  %v78 = vshrl.u32 %v77, 7
  %v79 = vsub.s32 1, %v78
  %v80 = vrot.slane %v71, %v79
  %vm83 = vcmask 941056
  %v85 = vsel %vm83, %v40, 0
  %vm87 = vcmask 1042432
  %v89 = vsel %vm87, %v69, 0
  %v92 = vsel %vm87, %v70, 0
  %94 = vmatprep.subr.mxu0 %v42
  %95 = vmatpush1.msra.mxu0 %v41
  %96 = vmatprep.subr.mxu0 %v44
  %97 = vmatpush1.msra.mxu0 %v43
  %98 = vmatprep.subr.mxu0 %v46
  %99 = vmatpush1.msra.mxu0 %v45
  %100 = vmatprep.subr.mxu0 %v48
  %101 = vmatpush1.msra.mxu0 %v47
  %102 = vmatprep.subr.mxu0 %v50
  %103 = vmatpush1.msra.mxu0 %v49
  %104 = vmatprep.subr.mxu0 %v52
  %105 = vmatpush1.msra.mxu0 %v51
  %106 = vmatprep.subr.mxu0 %v54
  %107 = vmatpush1.msra.mxu0 %v53
  %108 = vmatprep.subr.mxu0 %v56
  %109 = vmatpush1.msra.mxu0 %v55
  %110 = vmatprep.subr.mxu0 %v58
  %111 = vmatpush1.msra.mxu0 %v57
  %112 = vmatprep.subr.mxu0 %v60
  %113 = vmatpush1.msra.mxu0 %v59
  %114 = vmatprep.subr.mxu0 %v62
  %115 = vmatpush1.msra.mxu0 %v61
  %116 = vmatprep.subr.mxu0 %v64
  %117 = vmatpush1.msra.mxu0 %v63
  %118 = vmatprep.subr.mxu0 %v66
  %119 = vmatpush1.msra.mxu0 %v65
  %120 = vmatprep.subr.mxu0 %v68
  %121 = vmatpush1.msra.mxu0 %v67
  %122 = vmatprep.subr.mxu0 %v92
  %123 = vmatpush1.msra.mxu0 %v89
  %124 = vmatprep.subr.mxu0 0.0
  %125 = vmatpush1.msra.mxu0 0.0
  %126 = vmatprep.subr.mxu0 0.0
  %127 = vmatpush1.msra.mxu0 0.0
  %128 = vmatprep.subr.mxu0 0.0
  %129 = vmatpush1.msra.mxu0 0.0
  %130 = vmatprep.subr.mxu0 0.0
  %131 = vmatpush1.msra.mxu0 0.0
  %132 = vmatprep.subr.mxu0 0.0
  %133 = vmatpush1.msra.mxu0 0.0
  %134 = vmatprep.subr.mxu0 0.0
  %135 = vmatpush1.msra.mxu0 0.0
  %136 = vmatprep.subr.mxu0 0.0
  %137 = vmatpush1.msra.mxu0 0.0
  %138 = vmatprep.subr.mxu0 0.0
  %139 = vmatpush1.msra.mxu0 0.0
  %140 = vmatprep.subr.mxu0 0.0
  %141 = vmatpush1.msra.mxu0 0.0
  %142 = vmatprep.subr.mxu0 0.0
  %143 = vmatpush1.msra.mxu0 0.0
  %144 = vmatprep.subr.mxu0 0.0
  %145 = vmatpush1.msra.mxu0 0.0
  %146 = vmatprep.subr.mxu0 0.0
  %147 = vmatpush1.msra.mxu0 0.0
  %148 = vmatprep.subr.mxu0 0.0
  %149 = vmatpush1.msra.mxu0 0.0
  %150 = vmatprep.subr.mxu0 0.0
  %151 = vmatpush1.msra.mxu0 0.0
  %152 = vmatprep.subr.mxu0 0.0
  %153 = vmatpush1.msra.mxu0 0.0
  %154 = vmatprep.subr.mxu0 0.0
  %155 = vmatpush1.msra.mxu0 0.0
  %156 = vmatprep.subr.mxu0 0.0
  %157 = vmatpush1.msra.mxu0 0.0
  %158 = vmatprep.mubr.f32.mxu0 0.0
  %159 = vmatmul.mubr.f32.gmra.mrb[0].mxu0 %v85
  %v160 = vpop.f32.mrb[0].mxu0
  %v161 = vadd.f32 %v76, %v160
  %v162 = vpop.f32.mrb[0].mxu0
  %v163 = vadd.f32 %v80, %v162
  %164 = vdwg.mxu0
  %v165 = vmax.f32 %v161, 0.0
  %v166 = vmax.f32 %v163, 0.0
  %v167 = vld [vmem:[%s3] sm:$0xff]
  %v168 = vld [vmem:[%s3 + $0x8] sm:$0xff]
  %v169 = vld [vmem:[%s3 + $0x10] sm:$0xff]
  %v170 = vld [vmem:[%s3 + $0x18] sm:$0xff]
  %v171 = vld [vmem:[%s3 + $0x20] sm:$0xff]
  %v172 = vld [vmem:[%s3 + $0x28] sm:$0xff]
  %v173 = vld [vmem:[%s3 + $0x30] sm:$0xff]
  %v174 = vld [vmem:[%s3 + $0x38] sm:$0xff]
  %v175 = vld [vmem:[%s3 + $0x40] sm:$0xff]
  %v176 = vld [vmem:[%s3 + $0x48] sm:$0xff]
  %v177 = vld [vmem:[%s3 + $0x50] sm:$0xff]
  %v178 = vld [vmem:[%s3 + $0x58] sm:$0xff]
  %v179 = vld [vmem:[%s3 + $0x60] sm:$0xff]
  %v180 = vld [vmem:[%s3 + $0x68] sm:$0xff]
  %v181 = vld [vmem:[%s3 + $0x70] sm:$0xff]
  %v182 = vld [vmem:[%s3 + $0x78] sm:$0xff]
  %v183 = vld [vmem:[%s3 + $0x80] sm:$0xff]
  %v184 = vld [vmem:[%s3 + $0x88] sm:$0xff]
  %v185 = vld [vmem:[%s3 + $0x90] sm:$0xff]
  %v186 = vld [vmem:[%s3 + $0x98] sm:$0xff]
  %v187 = vld [vmem:[%s3 + $0xa0] sm:$0xff]
  %v188 = vld [vmem:[%s3 + $0xa8] sm:$0xff]
  %v189 = vld [vmem:[%s3 + $0xb0] sm:$0xff]
  %v190 = vld [vmem:[%s3 + $0xb8] sm:$0xff]
  %v191 = vld [vmem:[%s3 + $0xc0] sm:$0xff]
  %v192 = vld [vmem:[%s3 + $0xc8] sm:$0xff]
  %v193 = vld [vmem:[%s3 + $0xd0] sm:$0xff]
  %v194 = vld [vmem:[%s3 + $0xd8] sm:$0xff]
  %v195 = vld [vmem:[%s3 + $0xe0] sm:$0xff]
  %v196 = vld [vmem:[%s3 + $0xe8] sm:$0xff]
  %v197 = vld [vmem:[%s3 + $0xf0] sm:$0xff]
  %v198 = vld [vmem:[%s3 + $0xf8] sm:$0xff]
  %v199 = vld [vmem:[%s3 + $0x100] sm:$0xff]
  %v200 = vld [vmem:[%s3 + $0x108] sm:$0xff]
  %v201 = vld [vmem:[%s3 + $0x110] sm:$0xff]
  %v202 = vld [vmem:[%s3 + $0x118] sm:$0xff]
  %v203 = vld [vmem:[%s3 + $0x120] sm:$0xff]
  %v204 = vld [vmem:[%s3 + $0x128] sm:$0xff]
  %v205 = vld [vmem:[%s3 + $0x130] sm:$0xff]
  %v206 = vld [vmem:[%s3 + $0x138] sm:$0xff]
  %v207 = vld [vmem:[%s3 + $0x140] sm:$0xff]
  %v208 = vld [vmem:[%s3 + $0x148] sm:$0xff]
  %v209 = vld [vmem:[%s3 + $0x150] sm:$0xff]
  %v210 = vld [vmem:[%s3 + $0x158] sm:$0xff]
  %v211 = vld [vmem:[%s3 + $0x160] sm:$0xff]
  %v212 = vld [vmem:[%s3 + $0x168] sm:$0xff]
  %v213 = vld [vmem:[%s3 + $0x170] sm:$0xff]
  %v214 = vld [vmem:[%s3 + $0x178] sm:$0xff]
  %v215 = vld [vmem:[%s3 + $0x180] sm:$0xff]
  %v216 = vld [vmem:[%s3 + $0x188] sm:$0xff]
  %v217 = vld [vmem:[%s3 + $0x190] sm:$0xff]
  %v218 = vld [vmem:[%s3 + $0x198] sm:$0xff]
  %v219 = vld [vmem:[%s3 + $0x1a0] sm:$0xff]
  %v220 = vld [vmem:[%s3 + $0x1a8] sm:$0xff]
  %v221 = vld [vmem:[%s3 + $0x1b0] sm:$0xff]
  %v222 = vld [vmem:[%s3 + $0x1b8] sm:$0xff]
  %v223 = vld [vmem:[%s3 + $0x1c0] sm:$0xff]
  %v224 = vld [vmem:[%s3 + $0x1c8] sm:$0xff]
  %v225 = vld [vmem:[%s3 + $0x1d0] sm:$0xff]
  %v226 = vld [vmem:[%s3 + $0x1d8] sm:$0xff]
  %v227 = vld [vmem:[%s3 + $0x1e0] sm:$0xff]
  %v228 = vld [vmem:[%s3 + $0x1e8] sm:$0xff]
  %v229 = vld [vmem:[%s3 + $0x1f0] sm:$0xff]
  %v230 = vld [vmem:[%s3 + $0x1f8] sm:$0xff]
  %v231 = vld [vmem:[%s3 + $0x200] sm:$0xff]
  %v232 = vld [vmem:[%s3 + $0x208] sm:$0xff]
  %v233 = vld [vmem:[%s3 + $0x210] sm:$0xff]
  %v234 = vld [vmem:[%s3 + $0x218] sm:$0xff]
  %v235 = vld [vmem:[%s3 + $0x220] sm:$0xff]
  %v236 = vld [vmem:[%s3 + $0x228] sm:$0xff]
  %v237 = vld [vmem:[%s3 + $0x230] sm:$0xff]
  %v238 = vld [vmem:[%s3 + $0x238] sm:$0xff]
  %v239 = vld [vmem:[%s3 + $0x240] sm:$0xff]
  %v240 = vld [vmem:[%s3 + $0x248] sm:$0xff]
  %v241 = vld [vmem:[%s3 + $0x250] sm:$0xff]
  %v242 = vld [vmem:[%s3 + $0x258] sm:$0xff]
  %v243 = vld [vmem:[%s3 + $0x260] sm:$0xff]
  %v244 = vld [vmem:[%s3 + $0x268] sm:$0xff]
  %v245 = vld [vmem:[%s3 + $0x270] sm:$0xff]
  %v246 = vld [vmem:[%s3 + $0x278] sm:$0xff]
  %v247 = vld [vmem:[%s3 + $0x280] sm:$0xff]
  %v248 = vld [vmem:[%s3 + $0x288] sm:$0xff]
  %v249 = vld [vmem:[%s3 + $0x290] sm:$0xff]
  %v250 = vld [vmem:[%s3 + $0x298] sm:$0xff]
  %v251 = vld [vmem:[%s3 + $0x2a0] sm:$0xff]
  %v252 = vld [vmem:[%s3 + $0x2a8] sm:$0xff]
  %v253 = vld [vmem:[%s3 + $0x2b0] sm:$0xff]
  %v254 = vld [vmem:[%s3 + $0x2b8] sm:$0xff]
  %v255 = vld [vmem:[%s3 + $0x2c0] sm:$0xff]
  %v256 = vld [vmem:[%s3 + $0x2c8] sm:$0xff]
  %v257 = vld [vmem:[%s3 + $0x2d0] sm:$0xff]
  %v258 = vld [vmem:[%s3 + $0x2d8] sm:$0xff]
  %v259 = vld [vmem:[%s3 + $0x2e0] sm:$0xff]
  %v260 = vld [vmem:[%s3 + $0x2e8] sm:$0xff]
  %v261 = vld [vmem:[%s3 + $0x2f0] sm:$0xff]
  %v262 = vld [vmem:[%s3 + $0x2f8] sm:$0xff]
  %v263 = vld [vmem:[%s3 + $0x300] sm:$0xff]
  %v264 = vld [vmem:[%s3 + $0x308] sm:$0xff]
  %v265 = vld [vmem:[%s3 + $0x310] sm:$0xff]
  %v266 = vld [vmem:[%s3 + $0x318] sm:$0xff]
  %v267 = vld [vmem:[%s3 + $0x320] sm:$0xff]
  %v268 = vld [vmem:[%s3 + $0x328] sm:$0xff]
  %v269 = vld [vmem:[%s3 + $0x330] sm:$0xff]
  %v270 = vld [vmem:[%s3 + $0x338] sm:$0xff]
  %v271 = vld [vmem:[%s3 + $0x340] sm:$0xff]
  %v272 = vld [vmem:[%s3 + $0x348] sm:$0xff]
  %v273 = vld [vmem:[%s3 + $0x350] sm:$0xff]
  %v274 = vld [vmem:[%s3 + $0x358] sm:$0xff]
  %v275 = vld [vmem:[%s3 + $0x360] sm:$0xff]
  %v276 = vld [vmem:[%s3 + $0x368] sm:$0xff]
  %v277 = vld [vmem:[%s3 + $0x370] sm:$0xff]
  %v278 = vld [vmem:[%s3 + $0x378] sm:$0xff]
  %v279 = vld [vmem:[%s3 + $0x380] sm:$0xff]
  %v280 = vld [vmem:[%s3 + $0x388] sm:$0xff]
  %v281 = vld [vmem:[%s3 + $0x390] sm:$0xff]
  %v282 = vld [vmem:[%s3 + $0x398] sm:$0xff]
  %v283 = vld [vmem:[%s3 + $0x3a0] sm:$0xff]
  %v284 = vld [vmem:[%s3 + $0x3a8] sm:$0xff]
  %v285 = vld [vmem:[%s3 + $0x3b0] sm:$0xff]
  %v286 = vld [vmem:[%s3 + $0x3b8] sm:$0xff]
  %v287 = vld [vmem:[%s3 + $0x3c0] sm:$0xff]
  %v288 = vld [vmem:[%s3 + $0x3c8] sm:$0xff]
  %v289 = vld [vmem:[%s3 + $0x3d0] sm:$0xff]
  %v290 = vld [vmem:[%s3 + $0x3d8] sm:$0xff]
  %v291 = vld [vmem:[%s3 + $0x3e0] sm:$0xff]
  %v292 = vld [vmem:[%s3 + $0x3e8] sm:$0xff]
  %v293 = vld [vmem:[%s3 + $0x3f0] sm:$0xff]
  %v294 = vld [vmem:[%s3 + $0x3f8] sm:$0xff]
  %v295 = vld [vmem:[%s3 + $0x400] sm:$0xff]
  %v296 = vld [vmem:[%s3 + $0x408] sm:$0xff]
  %v297 = vld [vmem:[%s3 + $0x410] sm:$0xff]
  %v298 = vld [vmem:[%s3 + $0x418] sm:$0xff]
  %v299 = vld [vmem:[%s3 + $0x420] sm:$0xff]
  %v300 = vld [vmem:[%s3 + $0x428] sm:$0xff]
  %v301 = vld [vmem:[%s3 + $0x430] sm:$0xff]
  %v302 = vld [vmem:[%s3 + $0x438] sm:$0xff]
  %v303 = vld [vmem:[%s3 + $0x440] sm:$0xff]
  %v304 = vld [vmem:[%s3 + $0x448] sm:$0xff]
  %v305 = vld [vmem:[%s3 + $0x450] sm:$0xff]
  %v306 = vld [vmem:[%s3 + $0x458] sm:$0xff]
  %v307 = vld [vmem:[%s3 + $0x460] sm:$0xff]
  %v308 = vld [vmem:[%s3 + $0x468] sm:$0xff]
  %v309 = vld [vmem:[%s3 + $0x470] sm:$0xff]
  %v310 = vld [vmem:[%s3 + $0x478] sm:$0xff]
  %v311 = vld [vmem:[%s3 + $0x480] sm:$0xff]
  %v312 = vld [vmem:[%s3 + $0x488] sm:$0xff]
  %v313 = vld [vmem:[%s3 + $0x490] sm:$0xff]
  %v314 = vld [vmem:[%s3 + $0x498] sm:$0xff]
  %v315 = vld [vmem:[%s3 + $0x4a0] sm:$0xff]
  %v316 = vld [vmem:[%s3 + $0x4a8] sm:$0xff]
  %v317 = vld [vmem:[%s3 + $0x4b0] sm:$0xff]
  %v318 = vld [vmem:[%s3 + $0x4b8] sm:$0xff]
  %v319 = vld [vmem:[%s3 + $0x4c0] sm:$0xff]
  %v320 = vld [vmem:[%s3 + $0x4c8] sm:$0xff]
  %v321 = vld [vmem:[%s3 + $0x4d0] sm:$0xff]
  %v322 = vld [vmem:[%s3 + $0x4d8] sm:$0xf]
  %v323 = vld [vmem:[%s3 + $0x4e0] sm:$0xf]
  %v324 = vld [vmem:[%s3 + $0x4e8] sm:$0xf]
  %v325 = vld [vmem:[%s3 + $0x4f0] sm:$0xf]
  %v326 = vld [vmem:[%s3 + $0x4f8] sm:$0xf]
  %v327 = vld [vmem:[%s4] sm:$0x1f]
  %v329 = vlaneseq
  %v330 = vshrl.u32 %v329, 7
  %v331 = vsub.s32 0, %v330
  %v332 = vrot.slane %v327, %v331
  %v333 = vlaneseq
  %v334 = vshrl.u32 %v333, 7
  %v335 = vsub.s32 1, %v334
  %v336 = vrot.slane %v327, %v335
  %v337 = vlaneseq
  %v338 = vshrl.u32 %v337, 7
  %v339 = vsub.s32 2, %v338
  %v340 = vrot.slane %v327, %v339
  %v341 = vlaneseq
  %v342 = vshrl.u32 %v341, 7
  %v343 = vsub.s32 3, %v342
  %v344 = vrot.slane %v327, %v343
  %v345 = vlaneseq
  %v346 = vshrl.u32 %v345, 7
  %v347 = vsub.s32 4, %v346
  %v348 = vrot.slane %v327, %v347
  %vm354 = vcmask 1014784
  %v356 = vsel %vm354, %v166, 0
  %vm358 = vcmask 1043456
  %v360 = vsel %vm358, %v322, 0
  %v363 = vsel %vm358, %v323, 0
  %v366 = vsel %vm358, %v324, 0
  %v369 = vsel %vm358, %v325, 0
  %v372 = vsel %vm358, %v326, 0
  %374 = vmatprep.subr.mxu0 %v168
  %375 = vmatpush1.msra.mxu0 %v167
  %376 = vmatprep.subr.mxu0 %v173
  %377 = vmatpush1.msra.mxu0 %v172
  %378 = vmatprep.subr.mxu0 %v178
  %379 = vmatpush1.msra.mxu0 %v177
  %380 = vmatprep.subr.mxu0 %v183
  %381 = vmatpush1.msra.mxu0 %v182
  %382 = vmatprep.subr.mxu0 %v188
  %383 = vmatpush1.msra.mxu0 %v187
  %384 = vmatprep.subr.mxu0 %v193
  %385 = vmatpush1.msra.mxu0 %v192
  %386 = vmatprep.subr.mxu0 %v198
  %387 = vmatpush1.msra.mxu0 %v197
  %388 = vmatprep.subr.mxu0 %v203
  %389 = vmatpush1.msra.mxu0 %v202
  %390 = vmatprep.subr.mxu0 %v208
  %391 = vmatpush1.msra.mxu0 %v207
  %392 = vmatprep.subr.mxu0 %v213
  %393 = vmatpush1.msra.mxu0 %v212
  %394 = vmatprep.subr.mxu0 %v218
  %395 = vmatpush1.msra.mxu0 %v217
  %396 = vmatprep.subr.mxu0 %v223
  %397 = vmatpush1.msra.mxu0 %v222
  %398 = vmatprep.subr.mxu0 %v228
  %399 = vmatpush1.msra.mxu0 %v227
  %400 = vmatprep.subr.mxu0 %v233
  %401 = vmatpush1.msra.mxu0 %v232
  %402 = vmatprep.subr.mxu0 %v238
  %403 = vmatpush1.msra.mxu0 %v237
  %404 = vmatprep.subr.mxu0 %v243
  %405 = vmatpush1.msra.mxu0 %v242
  %406 = vmatprep.subr.mxu0 %v248
  %407 = vmatpush1.msra.mxu0 %v247
  %408 = vmatprep.subr.mxu0 %v253
  %409 = vmatpush1.msra.mxu0 %v252
  %410 = vmatprep.subr.mxu0 %v258
  %411 = vmatpush1.msra.mxu0 %v257
  %412 = vmatprep.subr.mxu0 %v263
  %413 = vmatpush1.msra.mxu0 %v262
  %414 = vmatprep.subr.mxu0 %v268
  %415 = vmatpush1.msra.mxu0 %v267
  %416 = vmatprep.subr.mxu0 %v273
  %417 = vmatpush1.msra.mxu0 %v272
  %418 = vmatprep.subr.mxu0 %v278
  %419 = vmatpush1.msra.mxu0 %v277
  %420 = vmatprep.subr.mxu0 %v283
  %421 = vmatpush1.msra.mxu0 %v282
  %422 = vmatprep.subr.mxu0 %v288
  %423 = vmatpush1.msra.mxu0 %v287
  %424 = vmatprep.subr.mxu0 %v293
  %425 = vmatpush1.msra.mxu0 %v292
  %426 = vmatprep.subr.mxu0 %v298
  %427 = vmatpush1.msra.mxu0 %v297
  %428 = vmatprep.subr.mxu0 %v303
  %429 = vmatpush1.msra.mxu0 %v302
  %430 = vmatprep.subr.mxu0 %v308
  %431 = vmatpush1.msra.mxu0 %v307
  %432 = vmatprep.subr.mxu0 %v313
  %433 = vmatpush1.msra.mxu0 %v312
  %434 = vmatprep.subr.mxu0 %v318
  %435 = vmatpush1.msra.mxu0 %v317
  %436 = vmatprep.subr.mxu0 %v363
  %437 = vmatpush1.msra.mxu0 %v360
  %438 = vmatprep.mubr.f32.mxu0 %v356
  %439 = vmatmul.mubr.f32.gmra.mrb[0].mxu0 %v165
  %v440 = vpop.f32.mrb[0].mxu0
  %v441 = vadd.f32 %v332, %v440
  %v442 = vpop.f32.mrb[0].mxu0
  %v443 = vadd.f32 %v336, %v442
  %444 = vdwg.mxu0
  %445 = vmatprep.subr.mxu0 %v170
  %446 = vmatpush1.msra.mxu0 %v169
  %447 = vmatprep.subr.mxu0 %v175
  %448 = vmatpush1.msra.mxu0 %v174
  %449 = vmatprep.subr.mxu0 %v180
  %450 = vmatpush1.msra.mxu0 %v179
  %451 = vmatprep.subr.mxu0 %v185
  %452 = vmatpush1.msra.mxu0 %v184
  %453 = vmatprep.subr.mxu0 %v190
  %454 = vmatpush1.msra.mxu0 %v189
  %455 = vmatprep.subr.mxu0 %v195
  %456 = vmatpush1.msra.mxu0 %v194
  %457 = vmatprep.subr.mxu0 %v200
  %458 = vmatpush1.msra.mxu0 %v199
  %459 = vmatprep.subr.mxu0 %v205
  %460 = vmatpush1.msra.mxu0 %v204
  %461 = vmatprep.subr.mxu0 %v210
  %462 = vmatpush1.msra.mxu0 %v209
  %463 = vmatprep.subr.mxu0 %v215
  %464 = vmatpush1.msra.mxu0 %v214
  %465 = vmatprep.subr.mxu0 %v220
  %466 = vmatpush1.msra.mxu0 %v219
  %467 = vmatprep.subr.mxu0 %v225
  %468 = vmatpush1.msra.mxu0 %v224
  %469 = vmatprep.subr.mxu0 %v230
  %470 = vmatpush1.msra.mxu0 %v229
  %471 = vmatprep.subr.mxu0 %v235
  %472 = vmatpush1.msra.mxu0 %v234
  %473 = vmatprep.subr.mxu0 %v240
  %474 = vmatpush1.msra.mxu0 %v239
  %475 = vmatprep.subr.mxu0 %v245
  %476 = vmatpush1.msra.mxu0 %v244
  %477 = vmatprep.subr.mxu0 %v250
  %478 = vmatpush1.msra.mxu0 %v249
  %479 = vmatprep.subr.mxu0 %v255
  %480 = vmatpush1.msra.mxu0 %v254
  %481 = vmatprep.subr.mxu0 %v260
  %482 = vmatpush1.msra.mxu0 %v259
  %483 = vmatprep.subr.mxu0 %v265
  %484 = vmatpush1.msra.mxu0 %v264
  %485 = vmatprep.subr.mxu0 %v270
  %486 = vmatpush1.msra.mxu0 %v269
  %487 = vmatprep.subr.mxu0 %v275
  %488 = vmatpush1.msra.mxu0 %v274
  %489 = vmatprep.subr.mxu0 %v280
  %490 = vmatpush1.msra.mxu0 %v279
  %491 = vmatprep.subr.mxu0 %v285
  %492 = vmatpush1.msra.mxu0 %v284
  %493 = vmatprep.subr.mxu0 %v290
  %494 = vmatpush1.msra.mxu0 %v289
  %495 = vmatprep.subr.mxu0 %v295
  %496 = vmatpush1.msra.mxu0 %v294
  %497 = vmatprep.subr.mxu0 %v300
  %498 = vmatpush1.msra.mxu0 %v299
  %499 = vmatprep.subr.mxu0 %v305
  %500 = vmatpush1.msra.mxu0 %v304
  %501 = vmatprep.subr.mxu0 %v310
  %502 = vmatpush1.msra.mxu0 %v309
  %503 = vmatprep.subr.mxu0 %v315
  %504 = vmatpush1.msra.mxu0 %v314
  %505 = vmatprep.subr.mxu0 %v320
  %506 = vmatpush1.msra.mxu0 %v319
  %507 = vmatprep.subr.mxu0 %v369
  %508 = vmatpush1.msra.mxu0 %v366
  %509 = vmatprep.mubr.f32.mxu0 %v356
  %510 = vmatmul.mubr.f32.gmra.mrb[0].mxu0 %v165
  %v511 = vpop.f32.mrb[0].mxu0
  %v512 = vadd.f32 %v340, %v511
  %v513 = vpop.f32.mrb[0].mxu0
  %v514 = vadd.f32 %v344, %v513
  %515 = vdwg.mxu0
  %516 = vmatprep.subr.mxu0 0.0
  %517 = vmatpush1.msra.mxu0 %v171
  %518 = vmatprep.subr.mxu0 0.0
  %519 = vmatpush1.msra.mxu0 %v176
  %520 = vmatprep.subr.mxu0 0.0
  %521 = vmatpush1.msra.mxu0 %v181
  %522 = vmatprep.subr.mxu0 0.0
  %523 = vmatpush1.msra.mxu0 %v186
  %524 = vmatprep.subr.mxu0 0.0
  %525 = vmatpush1.msra.mxu0 %v191
  %526 = vmatprep.subr.mxu0 0.0
  %527 = vmatpush1.msra.mxu0 %v196
  %528 = vmatprep.subr.mxu0 0.0
  %529 = vmatpush1.msra.mxu0 %v201
  %530 = vmatprep.subr.mxu0 0.0
  %531 = vmatpush1.msra.mxu0 %v206
  %532 = vmatprep.subr.mxu0 0.0
  %533 = vmatpush1.msra.mxu0 %v211
  %534 = vmatprep.subr.mxu0 0.0
  %535 = vmatpush1.msra.mxu0 %v216
  %536 = vmatprep.subr.mxu0 0.0
  %537 = vmatpush1.msra.mxu0 %v221
  %538 = vmatprep.subr.mxu0 0.0
  %539 = vmatpush1.msra.mxu0 %v226
  %540 = vmatprep.subr.mxu0 0.0
  %541 = vmatpush1.msra.mxu0 %v231
  %542 = vmatprep.subr.mxu0 0.0
  %543 = vmatpush1.msra.mxu0 %v236
  %544 = vmatprep.subr.mxu0 0.0
  %545 = vmatpush1.msra.mxu0 %v241
  %546 = vmatprep.subr.mxu0 0.0
  %547 = vmatpush1.msra.mxu0 %v246
  %548 = vmatprep.subr.mxu0 0.0
  %549 = vmatpush1.msra.mxu0 %v251
  %550 = vmatprep.subr.mxu0 0.0
  %551 = vmatpush1.msra.mxu0 %v256
  %552 = vmatprep.subr.mxu0 0.0
  %553 = vmatpush1.msra.mxu0 %v261
  %554 = vmatprep.subr.mxu0 0.0
  %555 = vmatpush1.msra.mxu0 %v266
  %556 = vmatprep.subr.mxu0 0.0
  %557 = vmatpush1.msra.mxu0 %v271
  %558 = vmatprep.subr.mxu0 0.0
  %559 = vmatpush1.msra.mxu0 %v276
  %560 = vmatprep.subr.mxu0 0.0
  %561 = vmatpush1.msra.mxu0 %v281
  %562 = vmatprep.subr.mxu0 0.0
  %563 = vmatpush1.msra.mxu0 %v286
  %564 = vmatprep.subr.mxu0 0.0
  %565 = vmatpush1.msra.mxu0 %v291
  %566 = vmatprep.subr.mxu0 0.0
  %567 = vmatpush1.msra.mxu0 %v296
  %568 = vmatprep.subr.mxu0 0.0
  %569 = vmatpush1.msra.mxu0 %v301
  %570 = vmatprep.subr.mxu0 0.0
  %571 = vmatpush1.msra.mxu0 %v306
  %572 = vmatprep.subr.mxu0 0.0
  %573 = vmatpush1.msra.mxu0 %v311
  %574 = vmatprep.subr.mxu0 0.0
  %575 = vmatpush1.msra.mxu0 %v316
  %576 = vmatprep.subr.mxu0 0.0
  %577 = vmatpush1.msra.mxu0 %v321
  %578 = vmatprep.subr.mxu0 0.0
  %579 = vmatpush1.msra.mxu0 %v372
  %580 = vmatprep.mubr.f32.mxu0 %v356
  %581 = vmatmul.mubr.f32.gmra.mrb[0].mxu0 %v165
  %v582 = vpop.f32.mrb[0].mxu0
  %v583 = vadd.f32 %v348, %v582
  %v584 = vpop.f32.mrb[0].mxu0
  %585 = vdwg.mxu0
  %v586 = vmax.f32 %v441, 0.0
  %v587 = vmax.f32 %v443, 0.0
  %v588 = vmax.f32 %v512, 0.0
  %v589 = vmax.f32 %v514, 0.0
  %v590 = vmax.f32 %v583, 0.0
  %v591 = vld [vmem:[%s5] sm:$0xff]
  %v592 = vld [vmem:[%s5 + $0x8] sm:$0xff]
  %v593 = vld [vmem:[%s5 + $0x10] sm:$0xff]
  %v594 = vld [vmem:[%s5 + $0x18] sm:$0xff]
  %v595 = vld [vmem:[%s5 + $0x20] sm:$0xff]
  %v596 = vld [vmem:[%s5 + $0x28] sm:$0xff]
  %v597 = vld [vmem:[%s5 + $0x30] sm:$0xff]
  %v598 = vld [vmem:[%s5 + $0x38] sm:$0xff]
  %v599 = vld [vmem:[%s5 + $0x40] sm:$0xff]
  %v600 = vld [vmem:[%s5 + $0x48] sm:$0xff]
  %v601 = vld [vmem:[%s5 + $0x50] sm:$0xff]
  %v602 = vld [vmem:[%s5 + $0x58] sm:$0xff]
  %v603 = vld [vmem:[%s5 + $0x60] sm:$0xff]
  %v604 = vld [vmem:[%s5 + $0x68] sm:$0xff]
  %v605 = vld [vmem:[%s5 + $0x70] sm:$0xff]
  %v606 = vld [vmem:[%s5 + $0x78] sm:$0xff]
  %v607 = vld [vmem:[%s5 + $0x80] sm:$0xff]
  %v608 = vld [vmem:[%s5 + $0x88] sm:$0xff]
  %v609 = vld [vmem:[%s5 + $0x90] sm:$0xff]
  %v610 = vld [vmem:[%s5 + $0x98] sm:$0xff]
  %v611 = vld [vmem:[%s5 + $0xa0] sm:$0xff]
  %v612 = vld [vmem:[%s5 + $0xa8] sm:$0xff]
  %v613 = vld [vmem:[%s5 + $0xb0] sm:$0xff]
  %v614 = vld [vmem:[%s5 + $0xb8] sm:$0xff]
  %v615 = vld [vmem:[%s5 + $0xc0] sm:$0xff]
  %v616 = vld [vmem:[%s5 + $0xc8] sm:$0xff]
  %v617 = vld [vmem:[%s5 + $0xd0] sm:$0xff]
  %v618 = vld [vmem:[%s5 + $0xd8] sm:$0xff]
  %v619 = vld [vmem:[%s5 + $0xe0] sm:$0xff]
  %v620 = vld [vmem:[%s5 + $0xe8] sm:$0xff]
  %v621 = vld [vmem:[%s5 + $0xf0] sm:$0xff]
  %v622 = vld [vmem:[%s5 + $0xf8] sm:$0xff]
  %v623 = vld [vmem:[%s5 + $0x100] sm:$0xff]
  %v624 = vld [vmem:[%s5 + $0x108] sm:$0xff]
  %v625 = vld [vmem:[%s5 + $0x110] sm:$0xff]
  %v626 = vld [vmem:[%s5 + $0x118] sm:$0xff]
  %v627 = vld [vmem:[%s5 + $0x120] sm:$0xff]
  %v628 = vld [vmem:[%s5 + $0x128] sm:$0xff]
  %v629 = vld [vmem:[%s5 + $0x130] sm:$0xff]
  %v630 = vld [vmem:[%s5 + $0x138] sm:$0xff]
  %v631 = vld [vmem:[%s5 + $0x140] sm:$0xff]
  %v632 = vld [vmem:[%s5 + $0x148] sm:$0xff]
  %v633 = vld [vmem:[%s5 + $0x150] sm:$0xff]
  %v634 = vld [vmem:[%s5 + $0x158] sm:$0xff]
  %v635 = vld [vmem:[%s5 + $0x160] sm:$0xff]
  %v636 = vld [vmem:[%s5 + $0x168] sm:$0xff]
  %v637 = vld [vmem:[%s5 + $0x170] sm:$0xff]
  %v638 = vld [vmem:[%s5 + $0x178] sm:$0xff]
  %v639 = vld [vmem:[%s5 + $0x180] sm:$0xff]
  %v640 = vld [vmem:[%s5 + $0x188] sm:$0xff]
  %v641 = vld [vmem:[%s5 + $0x190] sm:$0xff]
  %v642 = vld [vmem:[%s5 + $0x198] sm:$0xff]
  %v643 = vld [vmem:[%s5 + $0x1a0] sm:$0xff]
  %v644 = vld [vmem:[%s5 + $0x1a8] sm:$0xff]
  %v645 = vld [vmem:[%s5 + $0x1b0] sm:$0xff]
  %v646 = vld [vmem:[%s5 + $0x1b8] sm:$0xff]
  %v647 = vld [vmem:[%s5 + $0x1c0] sm:$0xff]
  %v648 = vld [vmem:[%s5 + $0x1c8] sm:$0xff]
  %v649 = vld [vmem:[%s5 + $0x1d0] sm:$0xff]
  %v650 = vld [vmem:[%s5 + $0x1d8] sm:$0xff]
  %v651 = vld [vmem:[%s5 + $0x1e0] sm:$0xff]
  %v652 = vld [vmem:[%s5 + $0x1e8] sm:$0xff]
  %v653 = vld [vmem:[%s5 + $0x1f0] sm:$0xff]
  %v654 = vld [vmem:[%s5 + $0x1f8] sm:$0xff]
  %v655 = vld [vmem:[%s5 + $0x200] sm:$0xff]
  %v656 = vld [vmem:[%s5 + $0x208] sm:$0xff]
  %v657 = vld [vmem:[%s5 + $0x210] sm:$0xff]
  %v658 = vld [vmem:[%s5 + $0x218] sm:$0xff]
  %v659 = vld [vmem:[%s5 + $0x220] sm:$0xff]
  %v660 = vld [vmem:[%s5 + $0x228] sm:$0xff]
  %v661 = vld [vmem:[%s5 + $0x230] sm:$0xff]
  %v662 = vld [vmem:[%s5 + $0x238] sm:$0xff]
  %v663 = vld [vmem:[%s5 + $0x240] sm:$0xff]
  %v664 = vld [vmem:[%s5 + $0x248] sm:$0xff]
  %v665 = vld [vmem:[%s5 + $0x250] sm:$0xff]
  %v666 = vld [vmem:[%s5 + $0x258] sm:$0xff]
  %v667 = vld [vmem:[%s6] sm:$0x1]
  %v669 = vlaneseq
  %v670 = vshrl.u32 %v669, 7
  %v671 = vsub.s32 0, %v670
  %v672 = vrot.slane %v667, %v671
  %vm674 = vcmask 785408
  %v676 = vsel %vm674, %v590, 0
  %678 = vmatprep.subr.mxu0 0.0
  %679 = vmatpush1.msra.mxu0 %v591
  %680 = vmatprep.subr.mxu0 0.0
  %681 = vmatpush1.msra.mxu0 %v592
  %682 = vmatprep.subr.mxu0 0.0
  %683 = vmatpush1.msra.mxu0 %v593
  %684 = vmatprep.subr.mxu0 0.0
  %685 = vmatpush1.msra.mxu0 %v594
  %686 = vmatprep.subr.mxu0 0.0
  %687 = vmatpush1.msra.mxu0 %v595
  %688 = vmatprep.subr.mxu0 0.0
  %689 = vmatpush1.msra.mxu0 %v596
  %690 = vmatprep.subr.mxu0 0.0
  %691 = vmatpush1.msra.mxu0 %v597
  %692 = vmatprep.subr.mxu0 0.0
  %693 = vmatpush1.msra.mxu0 %v598
  %694 = vmatprep.subr.mxu0 0.0
  %695 = vmatpush1.msra.mxu0 %v599
  %696 = vmatprep.subr.mxu0 0.0
  %697 = vmatpush1.msra.mxu0 %v600
  %698 = vmatprep.subr.mxu0 0.0
  %699 = vmatpush1.msra.mxu0 %v601
  %700 = vmatprep.subr.mxu0 0.0
  %701 = vmatpush1.msra.mxu0 %v602
  %702 = vmatprep.subr.mxu0 0.0
  %703 = vmatpush1.msra.mxu0 %v603
  %704 = vmatprep.subr.mxu0 0.0
  %705 = vmatpush1.msra.mxu0 %v604
  %706 = vmatprep.subr.mxu0 0.0
  %707 = vmatpush1.msra.mxu0 %v605
  %708 = vmatprep.subr.mxu0 0.0
  %709 = vmatpush1.msra.mxu0 %v606
  %710 = vmatprep.subr.mxu0 0.0
  %711 = vmatpush1.msra.mxu0 %v607
  %712 = vmatprep.subr.mxu0 0.0
  %713 = vmatpush1.msra.mxu0 %v608
  %714 = vmatprep.subr.mxu0 0.0
  %715 = vmatpush1.msra.mxu0 %v609
  %716 = vmatprep.subr.mxu0 0.0
  %717 = vmatpush1.msra.mxu0 %v610
  %718 = vmatprep.subr.mxu0 0.0
  %719 = vmatpush1.msra.mxu0 %v611
  %720 = vmatprep.subr.mxu0 0.0
  %721 = vmatpush1.msra.mxu0 %v612
  %722 = vmatprep.subr.mxu0 0.0
  %723 = vmatpush1.msra.mxu0 %v613
  %724 = vmatprep.subr.mxu0 0.0
  %725 = vmatpush1.msra.mxu0 %v614
  %726 = vmatprep.subr.mxu0 0.0
  %727 = vmatpush1.msra.mxu0 %v615
  %728 = vmatprep.subr.mxu0 0.0
  %729 = vmatpush1.msra.mxu0 %v616
  %730 = vmatprep.subr.mxu0 0.0
  %731 = vmatpush1.msra.mxu0 %v617
  %732 = vmatprep.subr.mxu0 0.0
  %733 = vmatpush1.msra.mxu0 %v618
  %734 = vmatprep.subr.mxu0 0.0
  %735 = vmatpush1.msra.mxu0 %v619
  %736 = vmatprep.subr.mxu0 0.0
  %737 = vmatpush1.msra.mxu0 %v620
  %738 = vmatprep.subr.mxu0 0.0
  %739 = vmatpush1.msra.mxu0 %v621
  %740 = vmatprep.subr.mxu0 0.0
  %741 = vmatpush1.msra.mxu0 %v622
  %742 = vmatprep.mubr.f32.mxu0 %v587
  %743 = vmatmul.mubr.f32.gmra.mrb[0].mxu0 %v586
  %v744 = vpop.f32.mrb[0].mxu0
  %v745 = vadd.f32 %v672, %v744
  %v746 = vpop.f32.mrb[0].mxu0
  %747 = vdwg.mxu0
  %748 = vmatprep.subr.mxu0 0.0
  %749 = vmatpush1.msra.mxu0 %v623
  %750 = vmatprep.subr.mxu0 0.0
  %751 = vmatpush1.msra.mxu0 %v624
  %752 = vmatprep.subr.mxu0 0.0
  %753 = vmatpush1.msra.mxu0 %v625
  %754 = vmatprep.subr.mxu0 0.0
  %755 = vmatpush1.msra.mxu0 %v626
  %756 = vmatprep.subr.mxu0 0.0
  %757 = vmatpush1.msra.mxu0 %v627
  %758 = vmatprep.subr.mxu0 0.0
  %759 = vmatpush1.msra.mxu0 %v628
  %760 = vmatprep.subr.mxu0 0.0
  %761 = vmatpush1.msra.mxu0 %v629
  %762 = vmatprep.subr.mxu0 0.0
  %763 = vmatpush1.msra.mxu0 %v630
  %764 = vmatprep.subr.mxu0 0.0
  %765 = vmatpush1.msra.mxu0 %v631
  %766 = vmatprep.subr.mxu0 0.0
  %767 = vmatpush1.msra.mxu0 %v632
  %768 = vmatprep.subr.mxu0 0.0
  %769 = vmatpush1.msra.mxu0 %v633
  %770 = vmatprep.subr.mxu0 0.0
  %771 = vmatpush1.msra.mxu0 %v634
  %772 = vmatprep.subr.mxu0 0.0
  %773 = vmatpush1.msra.mxu0 %v635
  %774 = vmatprep.subr.mxu0 0.0
  %775 = vmatpush1.msra.mxu0 %v636
  %776 = vmatprep.subr.mxu0 0.0
  %777 = vmatpush1.msra.mxu0 %v637
  %778 = vmatprep.subr.mxu0 0.0
  %779 = vmatpush1.msra.mxu0 %v638
  %780 = vmatprep.subr.mxu0 0.0
  %781 = vmatpush1.msra.mxu0 %v639
  %782 = vmatprep.subr.mxu0 0.0
  %783 = vmatpush1.msra.mxu0 %v640
  %784 = vmatprep.subr.mxu0 0.0
  %785 = vmatpush1.msra.mxu0 %v641
  %786 = vmatprep.subr.mxu0 0.0
  %787 = vmatpush1.msra.mxu0 %v642
  %788 = vmatprep.subr.mxu0 0.0
  %789 = vmatpush1.msra.mxu0 %v643
  %790 = vmatprep.subr.mxu0 0.0
  %791 = vmatpush1.msra.mxu0 %v644
  %792 = vmatprep.subr.mxu0 0.0
  %793 = vmatpush1.msra.mxu0 %v645
  %794 = vmatprep.subr.mxu0 0.0
  %795 = vmatpush1.msra.mxu0 %v646
  %796 = vmatprep.subr.mxu0 0.0
  %797 = vmatpush1.msra.mxu0 %v647
  %798 = vmatprep.subr.mxu0 0.0
  %799 = vmatpush1.msra.mxu0 %v648
  %800 = vmatprep.subr.mxu0 0.0
  %801 = vmatpush1.msra.mxu0 %v649
  %802 = vmatprep.subr.mxu0 0.0
  %803 = vmatpush1.msra.mxu0 %v650
  %804 = vmatprep.subr.mxu0 0.0
  %805 = vmatpush1.msra.mxu0 %v651
  %806 = vmatprep.subr.mxu0 0.0
  %807 = vmatpush1.msra.mxu0 %v652
  %808 = vmatprep.subr.mxu0 0.0
  %809 = vmatpush1.msra.mxu0 %v653
  %810 = vmatprep.subr.mxu0 0.0
  %811 = vmatpush1.msra.mxu0 %v654
  %812 = vmatprep.mubr.f32.mxu0 %v589
  %813 = vmatmul.mubr.f32.gmra.mrb[0].mxu0 %v588
  %v814 = vpop.f32.mrb[0].mxu0
  %v815 = vadd.f32 %v745, %v814
  %v816 = vpop.f32.mrb[0].mxu0
  %817 = vdwg.mxu0
  %818 = vmatprep.subr.mxu0 0.0
  %819 = vmatpush1.msra.mxu0 %v655
  %820 = vmatprep.subr.mxu0 0.0
  %821 = vmatpush1.msra.mxu0 %v656
  %822 = vmatprep.subr.mxu0 0.0
  %823 = vmatpush1.msra.mxu0 %v657
  %824 = vmatprep.subr.mxu0 0.0
  %825 = vmatpush1.msra.mxu0 %v658
  %826 = vmatprep.subr.mxu0 0.0
  %827 = vmatpush1.msra.mxu0 %v659
  %828 = vmatprep.subr.mxu0 0.0
  %829 = vmatpush1.msra.mxu0 %v660
  %830 = vmatprep.subr.mxu0 0.0
  %831 = vmatpush1.msra.mxu0 %v661
  %832 = vmatprep.subr.mxu0 0.0
  %833 = vmatpush1.msra.mxu0 %v662
  %834 = vmatprep.subr.mxu0 0.0
  %835 = vmatpush1.msra.mxu0 %v663
  %836 = vmatprep.subr.mxu0 0.0
  %837 = vmatpush1.msra.mxu0 %v664
  %838 = vmatprep.subr.mxu0 0.0
  %839 = vmatpush1.msra.mxu0 %v665
  %840 = vmatprep.subr.mxu0 0.0
  %841 = vmatpush1.msra.mxu0 %v666
  %842 = vmatprep.subr.mxu0 0.0
  %843 = vmatpush1.msra.mxu0 0.0
  %844 = vmatprep.subr.mxu0 0.0
  %845 = vmatpush1.msra.mxu0 0.0
  %846 = vmatprep.subr.mxu0 0.0
  %847 = vmatpush1.msra.mxu0 0.0
  %848 = vmatprep.subr.mxu0 0.0
  %849 = vmatpush1.msra.mxu0 0.0
  %850 = vmatprep.subr.mxu0 0.0
  %851 = vmatpush1.msra.mxu0 0.0
  %852 = vmatprep.subr.mxu0 0.0
  %853 = vmatpush1.msra.mxu0 0.0
  %854 = vmatprep.subr.mxu0 0.0
  %855 = vmatpush1.msra.mxu0 0.0
  %856 = vmatprep.subr.mxu0 0.0
  %857 = vmatpush1.msra.mxu0 0.0
  %858 = vmatprep.subr.mxu0 0.0
  %859 = vmatpush1.msra.mxu0 0.0
  %860 = vmatprep.subr.mxu0 0.0
  %861 = vmatpush1.msra.mxu0 0.0
  %862 = vmatprep.subr.mxu0 0.0
  %863 = vmatpush1.msra.mxu0 0.0
  %864 = vmatprep.subr.mxu0 0.0
  %865 = vmatpush1.msra.mxu0 0.0
  %866 = vmatprep.subr.mxu0 0.0
  %867 = vmatpush1.msra.mxu0 0.0
  %868 = vmatprep.subr.mxu0 0.0
  %869 = vmatpush1.msra.mxu0 0.0
  %870 = vmatprep.subr.mxu0 0.0
  %871 = vmatpush1.msra.mxu0 0.0
  %872 = vmatprep.subr.mxu0 0.0
  %873 = vmatpush1.msra.mxu0 0.0
  %874 = vmatprep.subr.mxu0 0.0
  %875 = vmatpush1.msra.mxu0 0.0
  %876 = vmatprep.subr.mxu0 0.0
  %877 = vmatpush1.msra.mxu0 0.0
  %878 = vmatprep.subr.mxu0 0.0
  %879 = vmatpush1.msra.mxu0 0.0
  %880 = vmatprep.subr.mxu0 0.0
  %881 = vmatpush1.msra.mxu0 0.0
  %882 = vmatprep.mubr.f32.mxu0 0.0
  %883 = vmatmul.mubr.f32.gmra.mrb[0].mxu0 %v676
  %v884 = vpop.f32.mrb[0].mxu0
  %v885 = vadd.f32 %v815, %v884
  %v886 = vpop.f32.mrb[0].mxu0
  %887 = vdwg.mxu0
  %v888 = vmax.f32 %v885, 0.0
  %v889 = vld [vmem:[%s7] sm:$0xff]
  %v890 = vld [vmem:[%s7 + $0x8] sm:$0xff]
  %v891 = vld [vmem:[%s7 + $0x10] sm:$0xff]
  %v892 = vld [vmem:[%s7 + $0x18] sm:$0xff]
  %v893 = vld [vmem:[%s7 + $0x20] sm:$0xff]
  %v894 = vld [vmem:[%s7 + $0x28] sm:$0xff]
  %v895 = vld [vmem:[%s7 + $0x30] sm:$0xff]
  %v896 = vld [vmem:[%s7 + $0x38] sm:$0xf]
  %v897 = vld [vmem:[%s8] sm:$0x1]
  %v899 = vlaneseq
  %v900 = vshrl.u32 %v899, 7
  %v901 = vsub.s32 0, %v900
  %v902 = vrot.slane %v897, %v901
  %vm904 = vcmask 490496
  %v906 = vsel %vm904, %v888, 0
  %v909 = vsel %vm358, %v896, 0
  %911 = vmatprep.subr.mxu0 0.0
  %912 = vmatpush1.msra.mxu0 %v889
  %913 = vmatprep.subr.mxu0 0.0
  %914 = vmatpush1.msra.mxu0 %v890
  %915 = vmatprep.subr.mxu0 0.0
  %916 = vmatpush1.msra.mxu0 %v891
  %917 = vmatprep.subr.mxu0 0.0
  %918 = vmatpush1.msra.mxu0 %v892
  %919 = vmatprep.subr.mxu0 0.0
  %920 = vmatpush1.msra.mxu0 %v893
  %921 = vmatprep.subr.mxu0 0.0
  %922 = vmatpush1.msra.mxu0 %v894
  %923 = vmatprep.subr.mxu0 0.0
  %924 = vmatpush1.msra.mxu0 %v895
  %925 = vmatprep.subr.mxu0 0.0
  %926 = vmatpush1.msra.mxu0 %v909
  %927 = vmatprep.subr.mxu0 0.0
  %928 = vmatpush1.msra.mxu0 0.0
  %929 = vmatprep.subr.mxu0 0.0
  %930 = vmatpush1.msra.mxu0 0.0
  %931 = vmatprep.subr.mxu0 0.0
  %932 = vmatpush1.msra.mxu0 0.0
  %933 = vmatprep.subr.mxu0 0.0
  %934 = vmatpush1.msra.mxu0 0.0
  %935 = vmatprep.subr.mxu0 0.0
  %936 = vmatpush1.msra.mxu0 0.0
  %937 = vmatprep.subr.mxu0 0.0
  %938 = vmatpush1.msra.mxu0 0.0
  %939 = vmatprep.subr.mxu0 0.0
  %940 = vmatpush1.msra.mxu0 0.0
  %941 = vmatprep.subr.mxu0 0.0
  %942 = vmatpush1.msra.mxu0 0.0
  %943 = vmatprep.subr.mxu0 0.0
  %944 = vmatpush1.msra.mxu0 0.0
  %945 = vmatprep.subr.mxu0 0.0
  %946 = vmatpush1.msra.mxu0 0.0
  %947 = vmatprep.subr.mxu0 0.0
  %948 = vmatpush1.msra.mxu0 0.0
  %949 = vmatprep.subr.mxu0 0.0
  %950 = vmatpush1.msra.mxu0 0.0
  %951 = vmatprep.subr.mxu0 0.0
  %952 = vmatpush1.msra.mxu0 0.0
  %953 = vmatprep.subr.mxu0 0.0
  %954 = vmatpush1.msra.mxu0 0.0
  %955 = vmatprep.subr.mxu0 0.0
  %956 = vmatpush1.msra.mxu0 0.0
  %957 = vmatprep.subr.mxu0 0.0
  %958 = vmatpush1.msra.mxu0 0.0
  %959 = vmatprep.subr.mxu0 0.0
  %960 = vmatpush1.msra.mxu0 0.0
  %961 = vmatprep.subr.mxu0 0.0
  %962 = vmatpush1.msra.mxu0 0.0
  %963 = vmatprep.subr.mxu0 0.0
  %964 = vmatpush1.msra.mxu0 0.0
  %965 = vmatprep.subr.mxu0 0.0
  %966 = vmatpush1.msra.mxu0 0.0
  %967 = vmatprep.subr.mxu0 0.0
  %968 = vmatpush1.msra.mxu0 0.0
  %969 = vmatprep.subr.mxu0 0.0
  %970 = vmatpush1.msra.mxu0 0.0
  %971 = vmatprep.subr.mxu0 0.0
  %972 = vmatpush1.msra.mxu0 0.0
  %973 = vmatprep.subr.mxu0 0.0
  %974 = vmatpush1.msra.mxu0 0.0
  %975 = vmatprep.mubr.f32.mxu0 0.0
  %976 = vmatmul.mubr.f32.gmra.mrb[0].mxu0 %v906
  %v977 = vpop.f32.mrb[0].mxu0
  %v978 = vadd.f32 %v902, %v977
  %v979 = vpop.f32.mrb[0].mxu0
  %980 = vdwg.mxu0
  %v981 = vmax.f32 %v978, 0.0
  %v982 = vld [vmem:[%s9] sm:$0x1]
  %v984 = vlaneseq
  %v985 = vshrl.u32 %v984, 7
  %v986 = vsub.s32 0, %v985
  %v987 = vrot.slane %v982, %v986
  %v989 = vmul.f32 %v981, %v987
  %vm990 = vcmask 162816
  %v991 = vsel %vm990, %v989, 0.0
  %992 = vadd.xlane.f32.xlu0 %v991
  %v993 = vpop.xlane.xlu0 %992
  %v994 = vld [vmem:[#allocation2] sm:$0x1]
  %v996 = vlaneseq
  %v997 = vshrl.u32 %v996, 7
  %v998 = vsub.s32 0, %v997
  %v999 = vrot.slane %v994, %v998
  %v1001 = vadd.f32 %v993, %v999
  %v1002 = vxor.u32 %v1001, 2147483648
  %v1003 = vmul.f32 %v1002, 1.442695
  %v1004 = vpow.pop %v1003
  %v1005 = vadd.f32 %v1004, 1.0
  %v1006 = vrcp.pop %v1005
  %v1007 = vmul.f32 1.0, %v1006
  %vm1008 = vcmask 7168
  %1009 = vst.msk [vmem:[%s11] sm:$0xff] %vm1008, %v1007
  // Predicated region
  $region46: #{tpu_custom_call.1} parent=0 // pred_check
    _
  $region47: #{tpu_custom_call.1} parent=0 // pred_check_branch
    %1011 = sbr.rel (0) target = $region49
  $region48: #{tpu_custom_call.1} parent=0 // pred_region
    _
  $region49: #{tpu_custom_call.1} parent=0 // pred_fallthru
    _
  // Predicated region
  $region50: #{tpu_custom_call.1} parent=0 // pred_check
    _
  $region51: #{tpu_custom_call.1} parent=0 // pred_check_branch
    %1013 = sbr.rel (0) target = $region53
  $region52: #{tpu_custom_call.1} parent=0 // pred_region
    _
  $region53: #{tpu_custom_call.1} parent=0 // pred_fallthru
    _

</llo_original>
